<compile_context>
chip_gen: v7x
topology: tpu7x:2x2x1
jax: 0.10.0
libtpu: 0.0.40
codegen_flags: <defaults>
</compile_context>

<pallas_src>
import jax
import jax.numpy as jnp
from jax.experimental import pallas as pl
from jax.experimental.pallas import tpu as pltpu


# ----------------------------------------------------------------------------
# Tiling / budgeting helpers
# ----------------------------------------------------------------------------
def _row_tile(n_rows: int, n_cols: int, dtype_bytes: int = 4,
              target_bytes: int = 4 << 20) -> int:
    """Largest 8-aligned divisor of n_rows whose (tile, n_cols) slab is <= target."""
    assert n_rows % 8 == 0, "pad rows to a multiple of 8 before tiling"
    max_rows = max(8, target_bytes // max(1, n_cols * dtype_bytes))
    if n_rows <= max_rows:
        return n_rows
    best = 8
    for cand in range(8, (max_rows // 8) * 8 + 1, 8):
        if n_rows % cand == 0:
            best = cand
    return best


def _batch_tile(batch: int, per_item_bytes: int,
                target_bytes: int = 4 << 20) -> int:
    """Images per SE grid step: biggest divisor of `batch` fitting the target,
    preferring >=2 grid steps so both v7x TensorCores get work."""
    divisors = [d for d in range(1, batch + 1) if batch % d == 0]
    fitting = [d for d in divisors if d * per_item_bytes <= target_bytes] or [1]
    bt = max(fitting)
    if batch > 1 and batch // bt < 2:
        two_step = [d for d in fitting if batch // d >= 2]
        if two_step:
            bt = max(two_step)
    return bt


def _vmem_limit(tile_bytes) -> int:
    """Double-buffered in/out tiles + slack, clamped to a v7x-safe window."""
    need = 2 * sum(tile_bytes) + (2 << 20)
    return int(min(max(need, 8 << 20), 32 << 20))


# ----------------------------------------------------------------------------
# Kernel 1: fused SEBlock (squeeze-excite), Bt images per grid step
# ----------------------------------------------------------------------------
def _se_kernel(x_ref, w1t_ref, w2t_ref, o_ref):
    # x_ref block: (Bt, C, HW), lane-dense along HW.
    x = x_ref[...].astype(jnp.float32)                       # (Bt, C, HW)
    y = jnp.mean(x, axis=2)                                  # (Bt, C)   global avg pool
    h = jnp.dot(y, w1t_ref[...],
                preferred_element_type=jnp.float32)          # (Bt, Cr)  1x1 conv (no bias)
    h = jnp.maximum(h, 0.0)                                  # ReLU
    s = jnp.dot(h, w2t_ref[...],
                preferred_element_type=jnp.float32)          # (Bt, C)   1x1 conv (no bias)
    s = jax.nn.sigmoid(s)                                    # sigmoid gate
    o_ref[...] = (x * s[:, :, None]).astype(o_ref.dtype)     # channel re-scale


def se_block(x: jax.Array, w1: jax.Array, w2: jax.Array) -> jax.Array:
    """SEBlock forward. x: (B, C, H, W); w1: (C//r, C); w2: (C, C//r)."""
    B, C, H, W = x.shape
    HW = H * W
    Cr = w1.shape[0]
    itemsize = jnp.dtype(x.dtype).itemsize
    x3 = x.reshape(B, C, HW)                                 # lane-dense: HW lanes

    Bt = _batch_tile(B, C * HW * itemsize)
    tile_bytes = Bt * C * HW * itemsize
    cost = pl.CostEstimate(
        flops=4 * B * C * Cr + 3 * B * C * HW,
        transcendentals=B * C,
        bytes_accessed=2 * x3.size * itemsize + (w1.size + w2.size) * 4,
    )
    out = pl.pallas_call(
        _se_kernel,
        out_shape=jax.ShapeDtypeStruct((B, C, HW), x.dtype),
        grid=(B // Bt,),
        in_specs=[
            pl.BlockSpec((Bt, C, HW), lambda b: (b, 0, 0)),
            pl.BlockSpec((C, Cr), lambda b: (0, 0)),
            pl.BlockSpec((Cr, C), lambda b: (0, 0)),
        ],
        out_specs=pl.BlockSpec((Bt, C, HW), lambda b: (b, 0, 0)),
        compiler_params=pltpu.CompilerParams(
            dimension_semantics=("parallel",),
            vmem_limit_bytes=_vmem_limit([tile_bytes, tile_bytes])),
        cost_estimate=cost,
    )(x3, w1.T, w2.T)                                         # (C,Cr), (Cr,C)
    return out.reshape(B, C, H, W)


# ----------------------------------------------------------------------------
# Kernel 2: fused (optional pos-embed add) + LayerNorm over the embedding dim
# ----------------------------------------------------------------------------
def _ln_math(x, g_ref, b_ref, o_ref):
    mean = jnp.mean(x, axis=-1, keepdims=True)
    xc = x - mean
    var = jnp.mean(xc * xc, axis=-1, keepdims=True)
    inv = jax.lax.rsqrt(var + 1e-5)
    g = g_ref[...].astype(jnp.float32)                        # (1, C) -> broadcasts
    b = b_ref[...].astype(jnp.float32)
    o_ref[...] = (xc * inv * g + b).astype(o_ref.dtype)


def _add_ln_kernel(x_ref, p_ref, g_ref, b_ref, o_ref):
    x = x_ref[...].astype(jnp.float32) + p_ref[...].astype(jnp.float32)
    _ln_math(x, g_ref, b_ref, o_ref)


def _ln_kernel(x_ref, g_ref, b_ref, o_ref):
    _ln_math(x_ref[...].astype(jnp.float32), g_ref, b_ref, o_ref)


def pos_layer_norm(x: jax.Array, gamma: jax.Array, beta: jax.Array,
                   pos: jax.Array | None = None) -> jax.Array:
    """LayerNorm(x (+ pos)).  x: (B, N, C); pos: (1, N, C); gamma/beta: (C,).
    Matches nn.LayerNorm(C) (eps=1e-5, biased variance)."""
    B, N, C = x.shape
    itemsize = jnp.dtype(x.dtype).itemsize

    # Pad the row axis to a multiple of 8 so it tiles at 8-row granularity
    # (rows are independent under LN; padded rows are sliced off at the end).
    Np = ((N + 7) // 8) * 8
    pad = Np - N
    xp = jnp.pad(x, ((0, 0), (0, pad), (0, 0))) if pad else x

    tn = _row_tile(Np, C, itemsize)
    tile_bytes = tn * C * itemsize
    x_spec = pl.BlockSpec((1, tn, C), lambda b, j: (b, j, 0))
    scale_spec = pl.BlockSpec((1, C), lambda b, j: (0, 0))

    args = [xp]
    in_specs = [x_spec]
    kernel = _ln_kernel
    bytes_accessed = 2 * xp.size * itemsize
    if pos is not None:
        pp = jnp.pad(pos, ((0, 0), (0, pad), (0, 0))) if pad else pos
        args.append(pp)
        in_specs.append(pl.BlockSpec((1, tn, C), lambda b, j: (0, j, 0)))
        kernel = _add_ln_kernel
        bytes_accessed += pp.size * itemsize
    args += [gamma.reshape(1, C), beta.reshape(1, C)]
    in_specs += [scale_spec, scale_spec]

    out = pl.pallas_call(
        kernel,
        out_shape=jax.ShapeDtypeStruct((B, Np, C), x.dtype),
        grid=(B, Np // tn),
        in_specs=in_specs,
        out_specs=x_spec,
        compiler_params=pltpu.CompilerParams(
            dimension_semantics=("parallel", "parallel"),
            vmem_limit_bytes=_vmem_limit([tile_bytes] * (3 if pos is not None else 2))),
        cost_estimate=pl.CostEstimate(
            flops=8 * B * Np * C,
            transcendentals=B * Np,
            bytes_accessed=bytes_accessed),
    )(*args)
    return out[:, :N, :] if pad else out


# ----------------------------------------------------------------------------
# All2Cross head (the part of All2Cross.forward that is specified & reproducible)
# ----------------------------------------------------------------------------
def all2cross_head(xs, pos_embeds, gammas, betas, ilkb=None, ucb=None,
                   cross_pos_embed=True):
    """xs = [(B, 1+n_p1, 96), (B, 1+n_p2, 384)] token streams from the pyramid."""
    # TODO(synk): PyramidFeatures (pretrained SwinTransformer + torchvision ResNet-50 + PatchMerging) requires external checkpoints and is not reproduced; its SEBlock stage is kernelized above.
    # TODO(synk): MultiScaleBlock cross-attention blocks (`for blk in self.blocks`) are not defined in the provided spec, so that loop is omitted rather than faked.
    outs = []
    for i, x in enumerate(xs):
        p = pos_embeds[i] if cross_pos_embed else None      # fused add+LN (single pass)
        outs.append(pos_layer_norm(x, gammas[i], betas[i], pos=p))
    return outs, ilkb, ucb


# ----------------------------------------------------------------------------
# Pure-JAX references
# ----------------------------------------------------------------------------
def _se_block_ref(x, w1, w2):
    y = x.mean(axis=(2, 3), keepdims=True)                   # (B, C, 1, 1)
    h = jnp.maximum(jnp.einsum('rc,bcij->brij', w1, y), 0.0)
    s = jax.nn.sigmoid(jnp.einsum('cr,brij->bcij', w2, h))
    return x * s


def _layer_norm_ref(x, g, b, eps=1e-5):
    m = x.mean(-1, keepdims=True)
    v = ((x - m) ** 2).mean(-1, keepdims=True)
    return (x - m) / jnp.sqrt(v + eps) * g + b


# ----------------------------------------------------------------------------
# Demo / correctness check
# ----------------------------------------------------------------------------
if __name__ == "__main__":
    key = jax.random.PRNGKey(0)
    keys = jax.random.split(key, 12)

    # --- SEBlock stage (small: B=2, C=64, 16x16 spatial, reduction=8) ---
    B, C, H, W, r = 2, 64, 16, 16, 8
    x_img = jax.random.normal(keys[0], (B, C, H, W), jnp.float32)
    se_w1 = 0.1 * jax.random.normal(keys[1], (C // r, C), jnp.float32)
    se_w2 = 0.1 * jax.random.normal(keys[2], (C, C // r), jnp.float32)

    se_out = jax.block_until_ready(se_block(x_img, se_w1, se_w2))
    se_ref = _se_block_ref(x_img, se_w1, se_w2)
    assert se_out.shape == x_img.shape and se_out.dtype == x_img.dtype
    assert jnp.allclose(se_out, se_ref, atol=1e-4, rtol=1e-4)

    # --- All2Cross head (small: 8x8 and 2x2 patch grids, embed dims (96, 384)) ---
    n_p = (8 * 8, 2 * 2)
    dims = (96, 384)
    xs = [jax.random.normal(keys[3 + i], (B, 1 + n_p[i], dims[i]), jnp.float32)
          for i in range(2)]
    pos = [0.02 * jax.random.normal(keys[5 + i], (1, 1 + n_p[i], dims[i]), jnp.float32)
           for i in range(2)]
    gammas = [1.0 + 0.1 * jax.random.normal(keys[7 + i], (dims[i],), jnp.float32)
              for i in range(2)]
    betas = [0.1 * jax.random.normal(keys[9 + i], (dims[i],), jnp.float32)
             for i in range(2)]
    ilkb, ucb = x_img, se_out  # pass-throughs in the real module (pyramid features)

    (out0, out1), out_ilkb, out_ucb = all2cross_head(xs, pos, gammas, betas, ilkb, ucb)
    out0 = jax.block_until_ready(out0)
    out1 = jax.block_until_ready(out1)

    ref0 = _layer_norm_ref(xs[0] + pos[0], gammas[0], betas[0])
    ref1 = _layer_norm_ref(xs[1] + pos[1], gammas[1], betas[1])
    assert out0.shape == xs[0].shape and out1.shape == xs[1].shape
    assert jnp.allclose(out0, ref0, atol=1e-4, rtol=1e-4)
    assert jnp.allclose(out1, ref1, atol=1e-4, rtol=1e-4)

    # cross_pos_embed=False path (plain LayerNorm kernel)
    (nf0, _), _, _ = all2cross_head(xs, pos, gammas, betas, cross_pos_embed=False)
    nf0 = jax.block_until_ready(nf0)
    assert jnp.allclose(nf0, _layer_norm_ref(xs[0], gammas[0], betas[0]),
                        atol=1e-4, rtol=1e-4)

    print("KERNEL_OK")
</pallas_src>

<mosaic_0001>
module attributes {stable_mosaic.version = 11 : i64} {
  func.func @_se_kernel(%arg0: i32, %arg1: memref<1x64x256xf32, #tpu.memory_space<vmem>>, %arg2: memref<64x8xf32, #tpu.memory_space<vmem>>, %arg3: memref<8x64xf32, #tpu.memory_space<vmem>>, %arg4: memref<1x64x256xf32, #tpu.memory_space<vmem>>) attributes {dimension_semantics = [#tpu.dimension_semantics<parallel>], iteration_bounds = array<i64: 2>, scalar_prefetch = 0 : i64, scratch_operands = 0 : i64, tpu.core_type = #tpu.core_type<tc>, window_params = [{transform_indices = @transform_0, window_bounds = array<i64: 1, 64, 256>}, {pipeline_mode = #tpu.pipeline_mode<synchronous>, transform_indices = @transform_1, window_bounds = array<i64: 64, 8>}, {pipeline_mode = #tpu.pipeline_mode<synchronous>, transform_indices = @transform_2, window_bounds = array<i64: 8, 64>}, {transform_indices = @transform_3, window_bounds = array<i64: 1, 64, 256>}]} {
    %c0 = arith.constant 0 : index
    %c0_0 = arith.constant 0 : index
    %c0_1 = arith.constant 0 : index
    %0 = vector.load %arg1[%c0, %c0_0, %c0_1] : memref<1x64x256xf32, #tpu.memory_space<vmem>>, vector<1x64x256xf32>
    %cst = arith.constant dense<0.000000e+00> : vector<1x64xf32>
    %1 = vector.multi_reduction <add>, %0, %cst [2] : vector<1x64x256xf32> to vector<1x64xf32>
    %cst_2 = arith.constant 2.560000e+02 : f32
    %2 = vector.broadcast %cst_2 : f32 to vector<1x64xf32>
    %3 = arith.divf %1, %2 : vector<1x64xf32>
    %c0_3 = arith.constant 0 : index
    %c0_4 = arith.constant 0 : index
    %4 = vector.load %arg2[%c0_3, %c0_4] : memref<64x8xf32, #tpu.memory_space<vmem>>, vector<64x8xf32>
    %cst_5 = arith.constant dense<0.000000e+00> : vector<1x8xf32>
    %5 = tpu.matmul %3, %4, %cst_5 {dimension_numbers = #tpu.dot_dimension_numbers<[1], [0], [0], [1], [0, 0, 1, 1], [], []>} : vector<1x64xf32>, vector<64x8xf32>, vector<1x8xf32> -> vector<1x8xf32>
    %cst_6 = arith.constant 0.000000e+00 : f32
    %6 = vector.broadcast %cst_6 : f32 to vector<1x8xf32>
    %7 = arith.maximumf %5, %6 : vector<1x8xf32>
    %c0_7 = arith.constant 0 : index
    %c0_8 = arith.constant 0 : index
    %8 = vector.load %arg3[%c0_7, %c0_8] : memref<8x64xf32, #tpu.memory_space<vmem>>, vector<8x64xf32>
    %cst_9 = arith.constant dense<0.000000e+00> : vector<1x64xf32>
    %9 = tpu.matmul %7, %8, %cst_9 {dimension_numbers = #tpu.dot_dimension_numbers<[1], [0], [0], [1], [0, 0, 1, 1], [], []>} : vector<1x8xf32>, vector<8x64xf32>, vector<1x64xf32> -> vector<1x64xf32>
    %10 = arith.negf %9 : vector<1x64xf32>
    %11 = math.exp %10 : vector<1x64xf32>
    %cst_10 = arith.constant 1.000000e+00 : f32
    %12 = vector.broadcast %cst_10 : f32 to vector<1x64xf32>
    %13 = arith.addf %12, %11 : vector<1x64xf32>
    %14 = arith.divf %12, %13 : vector<1x64xf32>
    %15 = vector.shape_cast %14 : vector<1x64xf32> to vector<1x64x1xf32>
    %16 = vector.broadcast %15 : vector<1x64x1xf32> to vector<1x64x256xf32>
    %17 = arith.mulf %0, %16 : vector<1x64x256xf32>
    %c0_11 = arith.constant 0 : index
    %c0_12 = arith.constant 0 : index
    %c0_13 = arith.constant 0 : index
    %18 = vector.load %arg4[%c0_11, %c0_12, %c0_13] : memref<1x64x256xf32, #tpu.memory_space<vmem>>, vector<1x64x256xf32>
    tpu.vector_store %arg4[%c0_11, %c0_12, %c0_13], %17 {strides = array<i32>} : memref<1x64x256xf32, #tpu.memory_space<vmem>>, vector<1x64x256xf32>,
    return
  }
  func.func @transform_0(%arg0: i32) -> (i32, i32, i32) {
    %c0_i32 = arith.constant 0 : i32
    %c0_i32_0 = arith.constant 0 : i32
    %c0_i32_1 = arith.constant 0 : i32
    return %arg0, %c0_i32, %c0_i32_0 : i32, i32, i32
  }
  func.func @transform_1(%arg0: i32) -> (i32, i32) {
    %c0_i32 = arith.constant 0 : i32
    %c0_i32_0 = arith.constant 0 : i32
    %c0_i32_1 = arith.constant 0 : i32
    return %c0_i32, %c0_i32_0 : i32, i32
  }
  func.func @transform_2(%arg0: i32) -> (i32, i32) {
    %c0_i32 = arith.constant 0 : i32
    %c0_i32_0 = arith.constant 0 : i32
    %c0_i32_1 = arith.constant 0 : i32
    return %c0_i32, %c0_i32_0 : i32, i32
  }
  func.func @transform_3(%arg0: i32) -> (i32, i32, i32) {
    %c0_i32 = arith.constant 0 : i32
    %c0_i32_0 = arith.constant 0 : i32
    %c0_i32_1 = arith.constant 0 : i32
    return %arg0, %c0_i32, %c0_i32_0 : i32, i32, i32
  }
}

</mosaic_0001>

<llo_original>
// kernel: tpu_custom_call.1
$region0: #{tpu_custom_call.1}
  #allocation0 [shape = 'u32[]', space=smem, size = 0x4, offset = 0x4, fixed_abs, tag = 'smem constant byte address 0x4 - core index']
  #allocation1 [shape = 'u32[144,128]{1,0:T(1,128)}', space=vmem, size = 0x12000, scoped, tag = 'internal scratch']
  %s0 = inlined_call_operand.hbm [shape: f32[2,64,256], index: 0, kind: input, shape index: {}]
  %s1 = inlined_call_operand.vmem [shape: f32[64,8], index: 1, kind: input, shape index: {}]
  %s2 = inlined_call_operand.vmem [shape: f32[8,64], index: 2, kind: input, shape index: {}]
  %s3 = inlined_call_operand.hbm [shape: f32[2,64,256], index: 3, kind: output, shape index: {}]
  %s4 = sld [smem:[#allocation0]]
  $region49: #{tpu_custom_call.1} parent=0
    _
  %s6 = ssub.s32 1, %s4
  %s7 = scalar_select 0, %s6, %s4
  $region1: #{tpu_custom_call.1} parent=0
    #allocation2 [shape = 'u8[131072]{0}', space=vmem, size = 0x20000, scoped, tag = 'input window, operand 0']
    #allocation3 [shape = 's32[2]{0}', space=sflag, size = 0x8, scoped, tag = 'scoped memory for tpu_custom_call.1']
    #allocation4 [shape = 's32[2]{0}', space=sflag, size = 0x8, scoped, tag = 'scoped memory for tpu_custom_call.1']
    #allocation5 [shape = 'u8[131072]{0}', space=vmem, size = 0x20000, scoped, tag = 'output window, operand 0']
    %8 = vsyncpa [#allocation3], 0
    %s9 = scalar_lea.sflag [#allocation3], 1
    %10 = vsyncpa %s9, 0
    %11 = vsyncpa [#allocation4], 0
    %s12 = scalar_lea.sflag [#allocation4], 1
    %13 = vsyncpa %s12, 0
    loop: start=0, step=1, limit=4
    $region2: #{tpu_custom_call.1} parent=1 // loop_pre_header
      _
    $region3: #{tpu_custom_call.1} parent=1 // loop_header
      %s15 = sphi 0, %s19
      %p16 = scmp.ge.s32.totalorder %s15, 4
      %s25 = sphi 0, %s27
      %s28 = sphi 0, %s25
      %s29 = sphi 0, %s28
      %s45 = sphi 0, %s29
      %s49 = sphi 0, %s49
      %s51 = sphi 0, %s49
      %s52 = sphi 0, %s51
      %s66 = sphi 0, %s52
      %s70 = sphi 0, %s70
      %s72 = sphi 0, %s70
      %s73 = sphi 0, %s72
      %s87 = sphi 0, %s73
      %s93 = sphi 0, %s95
      %s96 = sphi 0, %s93
      %s97 = sphi 0, %s96
      %s113 = sphi 0, %s97
    $region4: #{tpu_custom_call.1} parent=1 // loop_header_branch
      %18 = sbr.rel (%p16) target = $region8
    $region5: #{tpu_custom_call.1} parent=1 // loop_body
      %s20 = ssub.s32 %s15, 1
      %s21 = ssub.s32 %s15, 2
      %s22 = sadd.s32 %s15, 1
      %s23 = ssub.s32 %s15, %s22
      %p24 = scmp.eq.s32.totalorder %s23, 0
      %s26 = sadd.s32 %s25, 1
      %s27 = scalar_select %p24, %s25, %s26
      %p30 = pneg %p24
      %p31 = scmp.eq.s32.totalorder %s15, 1
      %p32 = por %p30, %p31
      %p33 = scmp.ne.s32.totalorder %s25, %s28
      %p34 = scmp.eq.s32.totalorder %s15, 0
      %p35 = por %p33, %p34
      %p36 = scmp.ne.s32.totalorder %s25, %s28
      %p37 = scmp.eq.s32.totalorder %s20, 1
      %p38 = por %p36, %p37
      %p39 = scmp.ne.s32.totalorder %s28, %s29
      %p40 = scmp.eq.s32.totalorder %s20, 0
      %p41 = por %p39, %p40
      %p42 = scmp.ne.s32.totalorder %s28, %s29
      %p43 = scmp.eq.s32.totalorder %s21, 1
      %p44 = por %p42, %p43
      %p46 = scmp.ne.s32.totalorder %s29, %s45
      %p47 = scmp.eq.s32.totalorder %s21, 0
      %p48 = por %p46, %p47
      %s50 = sadd.s32 %s49, 1
      %p53 = scmp.eq.s32.totalorder %s15, 1
      %p54 = scmp.ne.s32.totalorder %s49, %s51
      %p55 = scmp.eq.s32.totalorder %s15, 0
      %p56 = por %p54, %p55
      %p57 = scmp.ne.s32.totalorder %s49, %s51
      %p58 = scmp.eq.s32.totalorder %s20, 1
      %p59 = por %p57, %p58
      %p60 = scmp.ne.s32.totalorder %s51, %s52
      %p61 = scmp.eq.s32.totalorder %s20, 0
      %p62 = por %p60, %p61
      %p63 = scmp.ne.s32.totalorder %s51, %s52
      %p64 = scmp.eq.s32.totalorder %s21, 1
      %p65 = por %p63, %p64
      %p67 = scmp.ne.s32.totalorder %s52, %s66
      %p68 = scmp.eq.s32.totalorder %s21, 0
      %p69 = por %p67, %p68
      %s71 = sadd.s32 %s70, 1
      %p74 = scmp.eq.s32.totalorder %s15, 1
      %p75 = scmp.ne.s32.totalorder %s70, %s72
      %p76 = scmp.eq.s32.totalorder %s15, 0
      %p77 = por %p75, %p76
      %p78 = scmp.ne.s32.totalorder %s70, %s72
      %p79 = scmp.eq.s32.totalorder %s20, 1
      %p80 = por %p78, %p79
      %p81 = scmp.ne.s32.totalorder %s72, %s73
      %p82 = scmp.eq.s32.totalorder %s20, 0
      %p83 = por %p81, %p82
      %p84 = scmp.ne.s32.totalorder %s72, %s73
      %p85 = scmp.eq.s32.totalorder %s21, 1
      %p86 = por %p84, %p85
      %p88 = scmp.ne.s32.totalorder %s73, %s87
      %p89 = scmp.eq.s32.totalorder %s21, 0
      %p90 = por %p88, %p89
      %s91 = ssub.s32 %s15, %s22
      %p92 = scmp.eq.s32.totalorder %s91, 0
      %s94 = sadd.s32 %s93, 1
      %s95 = scalar_select %p92, %s93, %s94
      %p98 = pneg %p92
      %p99 = scmp.eq.s32.totalorder %s15, 1
      %p100 = por %p98, %p99
      %p101 = scmp.ne.s32.totalorder %s93, %s96
      %p102 = scmp.eq.s32.totalorder %s15, 0
      %p103 = por %p101, %p102
      %p104 = scmp.ne.s32.totalorder %s93, %s96
      %p105 = scmp.eq.s32.totalorder %s20, 1
      %p106 = por %p104, %p105
      %p107 = scmp.ne.s32.totalorder %s96, %s97
      %p108 = scmp.eq.s32.totalorder %s20, 0
      %p109 = por %p107, %p108
      %p110 = scmp.ne.s32.totalorder %s96, %s97
      %p111 = scmp.eq.s32.totalorder %s21, 1
      %p112 = por %p110, %p111
      %p114 = scmp.ne.s32.totalorder %s97, %s113
      %p115 = scmp.eq.s32.totalorder %s21, 0
      %p116 = por %p114, %p115
      %p117 = scmp.le.s32.totalorder 1, %s15
      %p118 = scmp.lt.s32.totalorder %s15, 3
      %p119 = pnand %p117, %p118
      %p120 = pneg %p119
      // Predicated region
      $region9: #{tpu_custom_call.1} parent=5 // pred_check
        _
      $region10: #{tpu_custom_call.1} parent=5 // pred_check_branch
        %122 = sbr.rel (%p119) target = $region12
      $region11: #{tpu_custom_call.1} parent=5 // pred_region
        %s123 = ssub.s32 %s15, 1
        // Predicated region
        $region13: #{tpu_custom_call.1} parent=11 // pred_check
          %p124 = pneg %p62
        $region14: #{tpu_custom_call.1} parent=11 // pred_check_branch
          %126 = sbr.rel (%p124) target = $region16
        $region15: #{tpu_custom_call.1} parent=11 // pred_region
          _
        $region16: #{tpu_custom_call.1} parent=11 // pred_fallthru
          _
        // Predicated region
        $region17: #{tpu_custom_call.1} parent=11 // pred_check
          %p127 = pneg %p83
        $region18: #{tpu_custom_call.1} parent=11 // pred_check_branch
          %129 = sbr.rel (%p127) target = $region20
        $region19: #{tpu_custom_call.1} parent=11 // pred_region
          _
        $region20: #{tpu_custom_call.1} parent=11 // pred_fallthru
          _
      $region12: #{tpu_custom_call.1} parent=5 // pred_fallthru
        _
      %p130 = scmp.lt.s32.totalorder %s15, 2
      // Predicated region
      $region21: #{tpu_custom_call.1} parent=5 // pred_check
        %p131 = pneg %p130
      $region22: #{tpu_custom_call.1} parent=5 // pred_check_branch
        %133 = sbr.rel (%p131) target = $region24
      $region23: #{tpu_custom_call.1} parent=5 // pred_region
        // Predicated region
        $region25: #{tpu_custom_call.1} parent=23 // pred_check
          %p134 = pneg %p35
        $region26: #{tpu_custom_call.1} parent=23 // pred_check_branch
          %136 = sbr.rel (%p134) target = $region28
        $region27: #{tpu_custom_call.1} parent=23 // pred_region
          %s137 = sand.u32 %s25, 1
          %s138 = scalar_lea.sflag [#allocation3], %s137
          %s139 = sand.u32 %s25, 1
          %s140 = smul.addr %s139, 128
          %s141 = scalar_lea.vmem [#allocation2], %s140
          %s143 = ssub.s32 2048, 2048
          %144 = vsyncadd %s138, %s143
          %s145 = smul.addr %s15, 16
          %s146 = smul.addr %s145, 128
          %s147 = scalar_lea.hbm %s0, %s146
          %s148 = sshll.u32 %s141, 4
          %s149 = int_to_ptr.vmem [resolvable:$true] %s148
          %154 = dma.hbm_to_vmem [thread:$0]  %s147, 2048, %s149, %s138, 256, 256, 16
        $region28: #{tpu_custom_call.1} parent=23 // pred_fallthru
          _
      $region24: #{tpu_custom_call.1} parent=5 // pred_fallthru
        _
      %p155 = scmp.le.s32.totalorder 1, %s15
      %p156 = scmp.lt.s32.totalorder %s15, 3
      %p157 = pnand %p155, %p156
      %p158 = pneg %p157
      // Predicated region
      $region29: #{tpu_custom_call.1} parent=5 // pred_check
        _
      $region30: #{tpu_custom_call.1} parent=5 // pred_check_branch
        %160 = sbr.rel (%p157) target = $region32
      $region31: #{tpu_custom_call.1} parent=5 // pred_region
        %s161 = ssub.s32 %s15, 1
        %s162 = sand.u32 %s28, 1
        %s163 = scalar_lea.sflag [#allocation3], %s162
        %s164 = sand.u32 %s28, 1
        %s165 = smul.addr %s164, 128
        %s166 = scalar_lea.vmem [#allocation2], %s165
        // Predicated region
        $region33: #{tpu_custom_call.1} parent=31 // pred_check
          %p167 = pneg %p41
        $region34: #{tpu_custom_call.1} parent=31 // pred_check_branch
          %169 = sbr.rel (%p167) target = $region36
        $region35: #{tpu_custom_call.1} parent=31 // pred_region
          %170 = dma.done %s163, 2048
        $region36: #{tpu_custom_call.1} parent=31 // pred_fallthru
          _
        %s171 = sand.u32 %s28, 1
        %s172 = scalar_lea.sflag [#allocation3], %s171
        %s173 = sand.u32 %s28, 1
        %s174 = smul.addr %s173, 128
        %s175 = scalar_lea.vmem [#allocation2], %s174
        %p176 = pneg %p41
        %p177 = pneg %p38
        %p178 = pneg %p62
        %p179 = pneg %p59
        %p180 = pneg %p83
        %p181 = pneg %p80
        %p182 = pneg %p109
        %p183 = pneg %p106
        %s184 = sand.u32 %s96, 1
        %s185 = scalar_lea.sflag [#allocation4], %s184
        %s186 = sand.u32 %s96, 1
        %s187 = smul.addr %s186, 128
        %s188 = scalar_lea.vmem [#allocation5], %s187
        %v189 = vld [vmem:[%s166] sm:$0xff]
        %v190 = vld [vmem:[%s166 + $0x8] sm:$0xff]
        %v191 = vld [vmem:[%s166 + $0x10] sm:$0xff]
        %v192 = vld [vmem:[%s166 + $0x18] sm:$0xff]
        %v193 = vld [vmem:[%s166 + $0x20] sm:$0xff]
        %v194 = vld [vmem:[%s166 + $0x28] sm:$0xff]
        %v195 = vld [vmem:[%s166 + $0x30] sm:$0xff]
        %v196 = vld [vmem:[%s166 + $0x38] sm:$0xff]
        %v197 = vld [vmem:[%s166 + $0x40] sm:$0xff]
        %v198 = vld [vmem:[%s166 + $0x48] sm:$0xff]
        %v199 = vld [vmem:[%s166 + $0x50] sm:$0xff]
        %v200 = vld [vmem:[%s166 + $0x58] sm:$0xff]
        %v201 = vld [vmem:[%s166 + $0x60] sm:$0xff]
        %v202 = vld [vmem:[%s166 + $0x68] sm:$0xff]
        %v203 = vld [vmem:[%s166 + $0x70] sm:$0xff]
        %v204 = vld [vmem:[%s166 + $0x78] sm:$0xff]
        %v205 = vadd.f32 %v189, %v190
        %206 = vadd.xlane.f32.xlu0 %v205
        %v207 = vpop.xlane.xlu0 %206
        %v208 = vadd.f32 %v191, %v192
        %209 = vadd.xlane.f32.xlu0 %v208
        %v210 = vpop.xlane.xlu0 %209
        %v211 = vadd.f32 %v193, %v194
        %212 = vadd.xlane.f32.xlu0 %v211
        %v213 = vpop.xlane.xlu0 %212
        %v214 = vadd.f32 %v195, %v196
        %215 = vadd.xlane.f32.xlu0 %v214
        %v216 = vpop.xlane.xlu0 %215
        %v217 = vadd.f32 %v197, %v198
        %218 = vadd.xlane.f32.xlu0 %v217
        %v219 = vpop.xlane.xlu0 %218
        %v220 = vadd.f32 %v199, %v200
        %221 = vadd.xlane.f32.xlu0 %v220
        %v222 = vpop.xlane.xlu0 %221
        %v223 = vadd.f32 %v201, %v202
        %224 = vadd.xlane.f32.xlu0 %v223
        %v225 = vpop.xlane.xlu0 %224
        %v226 = vadd.f32 %v203, %v204
        %227 = vadd.xlane.f32.xlu0 %v226
        %v228 = vpop.xlane.xlu0 %227
        %v229 = vrcp.pop 256.0
        %v230 = vmul.f32 %v207, %v229
        %v231 = vmul.f32 %v210, %v229
        %v232 = vmul.f32 %v213, %v229
        %v233 = vmul.f32 %v216, %v229
        %v234 = vmul.f32 %v219, %v229
        %v235 = vmul.f32 %v222, %v229
        %v236 = vmul.f32 %v225, %v229
        %v237 = vmul.f32 %v228, %v229
        %v238 = vld [vmem:[%s1] sm:$0xff]
        %v239 = vld [vmem:[%s1 + $0x8] sm:$0xff]
        %v240 = vld [vmem:[%s1 + $0x10] sm:$0xff]
        %v241 = vld [vmem:[%s1 + $0x18] sm:$0xff]
        %v242 = vld [vmem:[%s1 + $0x20] sm:$0xff]
        %v243 = vld [vmem:[%s1 + $0x28] sm:$0xff]
        %v244 = vld [vmem:[%s1 + $0x30] sm:$0xff]
        %v245 = vld [vmem:[%s1 + $0x38] sm:$0xff]
        %v254 = vlaneseq
        %v255 = vand.u32 %v254, 127
        %v256 = vlaneseq
        %v257 = vshrl.u32 %v256, 7
        %v258 = vsub.s32 %v255, %v257
        %v259 = vrot.slane %v230, %v258
        %v260 = vadd.s32 %v255, 4294967288
        %v261 = vlaneseq
        %v262 = vshrl.u32 %v261, 7
        %v263 = vsub.s32 %v260, %v262
        %v264 = vrot.slane %v231, %v263
        %vm265 = vcmask 130112
        %v266 = vsel %vm265, %v264, %v259
        %v267 = vadd.s32 %v255, 4294967280
        %v268 = vlaneseq
        %v269 = vshrl.u32 %v268, 7
        %v270 = vsub.s32 %v267, %v269
        %v271 = vrot.slane %v232, %v270
        %vm272 = vcmask 195712
        %v273 = vsel %vm272, %v271, %v266
        %v274 = vadd.s32 %v255, 4294967272
        %v275 = vlaneseq
        %v276 = vshrl.u32 %v275, 7
        %v277 = vsub.s32 %v274, %v276
        %v278 = vrot.slane %v233, %v277
        %vm279 = vcmask 261312
        %v280 = vsel %vm279, %v278, %v273
        %v281 = vadd.s32 %v255, 4294967264
        %v282 = vlaneseq
        %v283 = vshrl.u32 %v282, 7
        %v284 = vsub.s32 %v281, %v283
        %v285 = vrot.slane %v234, %v284
        %vm286 = vcmask 326912
        %v287 = vsel %vm286, %v285, %v280
        %v288 = vadd.s32 %v255, 4294967256
        %v289 = vlaneseq
        %v290 = vshrl.u32 %v289, 7
        %v291 = vsub.s32 %v288, %v290
        %v292 = vrot.slane %v235, %v291
        %vm293 = vcmask 392512
        %v294 = vsel %vm293, %v292, %v287
        %v295 = vadd.s32 %v255, 4294967248
        %v296 = vlaneseq
        %v297 = vshrl.u32 %v296, 7
        %v298 = vsub.s32 %v295, %v297
        %v299 = vrot.slane %v236, %v298
        %vm300 = vcmask 458112
        %v301 = vsel %vm300, %v299, %v294
        %v302 = vadd.s32 %v255, 4294967240
        %v303 = vlaneseq
        %v304 = vshrl.u32 %v303, 7
        %v305 = vsub.s32 %v302, %v304
        %v306 = vrot.slane %v237, %v305
        %vm307 = vcmask 523712
        %v308 = vsel %vm307, %v306, %v301
        %vm309 = vcmask 523264
        %v310 = vsel %vm309, %v308, 0
        %312 = vmatprep.subr.mxu0 0.0
        %313 = vmatpush1.msra.mxu0 %v238
        %314 = vmatprep.subr.mxu0 0.0
        %315 = vmatpush1.msra.mxu0 %v239
        %316 = vmatprep.subr.mxu0 0.0
        %317 = vmatpush1.msra.mxu0 %v240
        %318 = vmatprep.subr.mxu0 0.0
        %319 = vmatpush1.msra.mxu0 %v241
        %320 = vmatprep.subr.mxu0 0.0
        %321 = vmatpush1.msra.mxu0 %v242
        %322 = vmatprep.subr.mxu0 0.0
        %323 = vmatpush1.msra.mxu0 %v243
        %324 = vmatprep.subr.mxu0 0.0
        %325 = vmatpush1.msra.mxu0 %v244
        %326 = vmatprep.subr.mxu0 0.0
        %327 = vmatpush1.msra.mxu0 %v245
        %328 = vmatprep.subr.mxu0 0.0
        %329 = vmatpush1.msra.mxu0 0.0
        %330 = vmatprep.subr.mxu0 0.0
        %331 = vmatpush1.msra.mxu0 0.0
        %332 = vmatprep.subr.mxu0 0.0
        %333 = vmatpush1.msra.mxu0 0.0
        %334 = vmatprep.subr.mxu0 0.0
        %335 = vmatpush1.msra.mxu0 0.0
        %336 = vmatprep.subr.mxu0 0.0
        %337 = vmatpush1.msra.mxu0 0.0
        %338 = vmatprep.subr.mxu0 0.0
        %339 = vmatpush1.msra.mxu0 0.0
        %340 = vmatprep.subr.mxu0 0.0
        %341 = vmatpush1.msra.mxu0 0.0
        %342 = vmatprep.subr.mxu0 0.0
        %343 = vmatpush1.msra.mxu0 0.0
        %344 = vmatprep.subr.mxu0 0.0
        %345 = vmatpush1.msra.mxu0 0.0
        %346 = vmatprep.subr.mxu0 0.0
        %347 = vmatpush1.msra.mxu0 0.0
        %348 = vmatprep.subr.mxu0 0.0
        %349 = vmatpush1.msra.mxu0 0.0
        %350 = vmatprep.subr.mxu0 0.0
        %351 = vmatpush1.msra.mxu0 0.0
        %352 = vmatprep.subr.mxu0 0.0
        %353 = vmatpush1.msra.mxu0 0.0
        %354 = vmatprep.subr.mxu0 0.0
        %355 = vmatpush1.msra.mxu0 0.0
        %356 = vmatprep.subr.mxu0 0.0
        %357 = vmatpush1.msra.mxu0 0.0
        %358 = vmatprep.subr.mxu0 0.0
        %359 = vmatpush1.msra.mxu0 0.0
        %360 = vmatprep.subr.mxu0 0.0
        %361 = vmatpush1.msra.mxu0 0.0
        %362 = vmatprep.subr.mxu0 0.0
        %363 = vmatpush1.msra.mxu0 0.0
        %364 = vmatprep.subr.mxu0 0.0
        %365 = vmatpush1.msra.mxu0 0.0
        %366 = vmatprep.subr.mxu0 0.0
        %367 = vmatpush1.msra.mxu0 0.0
        %368 = vmatprep.subr.mxu0 0.0
        %369 = vmatpush1.msra.mxu0 0.0
        %370 = vmatprep.subr.mxu0 0.0
        %371 = vmatpush1.msra.mxu0 0.0
        %372 = vmatprep.subr.mxu0 0.0
        %373 = vmatpush1.msra.mxu0 0.0
        %374 = vmatprep.subr.mxu0 0.0
        %375 = vmatpush1.msra.mxu0 0.0
        %376 = vmatprep.mubr.f32.mxu0 0.0
        %377 = vmatmul.mubr.f32.gmra.mrb[0].mxu0 %v310
        %v378 = vpop.f32.mrb[0].mxu0
        %v379 = vadd.f32 0.0, %v378
        %v380 = vpop.f32.mrb[0].mxu0
        %381 = vdwg.mxu0
        %v382 = vmax.f32 %v379, 0.0
        %v383 = vld [vmem:[%s2] sm:$0xff]
        %vm384 = vcmask 64512
        %v386 = vsel %vm384, %v382, 0
        %388 = vmatprep.subr.mxu0 0.0
        %389 = vmatpush1.msra.mxu0 %v383
        %390 = vmatprep.subr.mxu0 0.0
        %391 = vmatpush1.msra.mxu0 0.0
        %392 = vmatprep.subr.mxu0 0.0
        %393 = vmatpush1.msra.mxu0 0.0
        %394 = vmatprep.subr.mxu0 0.0
        %395 = vmatpush1.msra.mxu0 0.0
        %396 = vmatprep.subr.mxu0 0.0
        %397 = vmatpush1.msra.mxu0 0.0
        %398 = vmatprep.subr.mxu0 0.0
        %399 = vmatpush1.msra.mxu0 0.0
        %400 = vmatprep.subr.mxu0 0.0
        %401 = vmatpush1.msra.mxu0 0.0
        %402 = vmatprep.subr.mxu0 0.0
        %403 = vmatpush1.msra.mxu0 0.0
        %404 = vmatprep.subr.mxu0 0.0
        %405 = vmatpush1.msra.mxu0 0.0
        %406 = vmatprep.subr.mxu0 0.0
        %407 = vmatpush1.msra.mxu0 0.0
        %408 = vmatprep.subr.mxu0 0.0
        %409 = vmatpush1.msra.mxu0 0.0
        %410 = vmatprep.subr.mxu0 0.0
        %411 = vmatpush1.msra.mxu0 0.0
        %412 = vmatprep.subr.mxu0 0.0
        %413 = vmatpush1.msra.mxu0 0.0
        %414 = vmatprep.subr.mxu0 0.0
        %415 = vmatpush1.msra.mxu0 0.0
        %416 = vmatprep.subr.mxu0 0.0
        %417 = vmatpush1.msra.mxu0 0.0
        %418 = vmatprep.subr.mxu0 0.0
        %419 = vmatpush1.msra.mxu0 0.0
        %420 = vmatprep.subr.mxu0 0.0
        %421 = vmatpush1.msra.mxu0 0.0
        %422 = vmatprep.subr.mxu0 0.0
        %423 = vmatpush1.msra.mxu0 0.0
        %424 = vmatprep.subr.mxu0 0.0
        %425 = vmatpush1.msra.mxu0 0.0
        %426 = vmatprep.subr.mxu0 0.0
        %427 = vmatpush1.msra.mxu0 0.0
        %428 = vmatprep.subr.mxu0 0.0
        %429 = vmatpush1.msra.mxu0 0.0
        %430 = vmatprep.subr.mxu0 0.0
        %431 = vmatpush1.msra.mxu0 0.0
        %432 = vmatprep.subr.mxu0 0.0
        %433 = vmatpush1.msra.mxu0 0.0
        %434 = vmatprep.subr.mxu0 0.0
        %435 = vmatpush1.msra.mxu0 0.0
        %436 = vmatprep.subr.mxu0 0.0
        %437 = vmatpush1.msra.mxu0 0.0
        %438 = vmatprep.subr.mxu0 0.0
        %439 = vmatpush1.msra.mxu0 0.0
        %440 = vmatprep.subr.mxu0 0.0
        %441 = vmatpush1.msra.mxu0 0.0
        %442 = vmatprep.subr.mxu0 0.0
        %443 = vmatpush1.msra.mxu0 0.0
        %444 = vmatprep.subr.mxu0 0.0
        %445 = vmatpush1.msra.mxu0 0.0
        %446 = vmatprep.subr.mxu0 0.0
        %447 = vmatpush1.msra.mxu0 0.0
        %448 = vmatprep.subr.mxu0 0.0
        %449 = vmatpush1.msra.mxu0 0.0
        %450 = vmatprep.subr.mxu0 0.0
        %451 = vmatpush1.msra.mxu0 0.0
        %452 = vmatprep.mubr.f32.mxu0 0.0
        %453 = vmatmul.mubr.f32.gmra.mrb[0].mxu0 %v386
        %v454 = vpop.f32.mrb[0].mxu0
        %v455 = vadd.f32 0.0, %v454
        %v456 = vpop.f32.mrb[0].mxu0
        %457 = vdwg.mxu0
        %v458 = vxor.u32 %v455, 2147483648
        %v459 = vmul.f32 %v458, 1.442695
        %v460 = vpow.pop %v459
        %v461 = vadd.f32 %v460, 1.0
        %v462 = vrcp.pop %v461
        %v463 = vmul.f32 1.0, %v462
        %v464 = vlaneseq
        %v465 = vshrl.u32 %v464, 7
        %v466 = vsub.s32 0, %v465
        %v467 = vrot.slane %v463, %v466
        %469 = vbcast.lane.b32.xlu0 %v467, 256
        %v470 = vpop.permute.xlu0 %469
        %s472 = sor.u32 256, 8
        %473 = vbcast.lane.b32.xlu0 %v467, %s472
        %v474 = vpop.permute.xlu0 %473
        %s476 = sor.u32 256, 16
        %477 = vbcast.lane.b32.xlu0 %v467, %s476
        %v478 = vpop.permute.xlu0 %477
        %s480 = sor.u32 256, 24
        %481 = vbcast.lane.b32.xlu0 %v467, %s480
        %v482 = vpop.permute.xlu0 %481
        %s484 = sor.u32 256, 32
        %485 = vbcast.lane.b32.xlu0 %v467, %s484
        %v486 = vpop.permute.xlu0 %485
        %s488 = sor.u32 256, 40
        %489 = vbcast.lane.b32.xlu0 %v467, %s488
        %v490 = vpop.permute.xlu0 %489
        %s492 = sor.u32 256, 48
        %493 = vbcast.lane.b32.xlu0 %v467, %s492
        %v494 = vpop.permute.xlu0 %493
        %s496 = sor.u32 256, 56
        %497 = vbcast.lane.b32.xlu0 %v467, %s496
        %v498 = vpop.permute.xlu0 %497
        %v499 = vmul.f32 %v189, %v470
        %v500 = vmul.f32 %v190, %v470
        %v501 = vmul.f32 %v191, %v474
        %v502 = vmul.f32 %v192, %v474
        %v503 = vmul.f32 %v193, %v478
        %v504 = vmul.f32 %v194, %v478
        %v505 = vmul.f32 %v195, %v482
        %v506 = vmul.f32 %v196, %v482
        %v507 = vmul.f32 %v197, %v486
        %v508 = vmul.f32 %v198, %v486
        %v509 = vmul.f32 %v199, %v490
        %v510 = vmul.f32 %v200, %v490
        %v511 = vmul.f32 %v201, %v494
        %v512 = vmul.f32 %v202, %v494
        %v513 = vmul.f32 %v203, %v498
        %v514 = vmul.f32 %v204, %v498
        %515 = vst [vmem:[%s188] sm:$0xff] %v499
        %516 = vst [vmem:[%s188 + $0x8] sm:$0xff] %v500
        %517 = vst [vmem:[%s188 + $0x10] sm:$0xff] %v501
        %518 = vst [vmem:[%s188 + $0x18] sm:$0xff] %v502
        %519 = vst [vmem:[%s188 + $0x20] sm:$0xff] %v503
        %520 = vst [vmem:[%s188 + $0x28] sm:$0xff] %v504
        %521 = vst [vmem:[%s188 + $0x30] sm:$0xff] %v505
        %522 = vst [vmem:[%s188 + $0x38] sm:$0xff] %v506
        %523 = vst [vmem:[%s188 + $0x40] sm:$0xff] %v507
        %524 = vst [vmem:[%s188 + $0x48] sm:$0xff] %v508
        %525 = vst [vmem:[%s188 + $0x50] sm:$0xff] %v509
        %526 = vst [vmem:[%s188 + $0x58] sm:$0xff] %v510
        %527 = vst [vmem:[%s188 + $0x60] sm:$0xff] %v511
        %528 = vst [vmem:[%s188 + $0x68] sm:$0xff] %v512
        %529 = vst [vmem:[%s188 + $0x70] sm:$0xff] %v513
        %530 = vst [vmem:[%s188 + $0x78] sm:$0xff] %v514
        %s531 = sand.u32 %s96, 1
        %s532 = scalar_lea.sflag [#allocation4], %s531
        %s533 = sand.u32 %s96, 1
        %s534 = smul.addr %s533, 128
        %s535 = scalar_lea.vmem [#allocation5], %s534
        // Predicated region
        $region37: #{tpu_custom_call.1} parent=31 // pred_check
          %p536 = pneg %p106
        $region38: #{tpu_custom_call.1} parent=31 // pred_check_branch
          %538 = sbr.rel (%p536) target = $region40
        $region39: #{tpu_custom_call.1} parent=31 // pred_region
          %s540 = ssub.s32 2048, 2048
          %541 = vsyncadd %s532, %s540
          %s542 = smul.addr %s20, 16
          %s543 = smul.addr %s542, 128
          %s544 = scalar_lea.hbm %s3, %s543
          %s545 = sshll.u32 %s535, 4
          %s546 = int_to_ptr.vmem [resolvable:$true] %s545
          %551 = dma.vmem_to_hbm [thread:$0]  %s546, 2048, %s544, %s532, 256, 256, 16
        $region40: #{tpu_custom_call.1} parent=31 // pred_fallthru
          _
      $region32: #{tpu_custom_call.1} parent=5 // pred_fallthru
        _
      %p552 = scmp.le.s32.totalorder 2, %s15
      // Predicated region
      $region41: #{tpu_custom_call.1} parent=5 // pred_check
        %p553 = pneg %p552
      $region42: #{tpu_custom_call.1} parent=5 // pred_check_branch
        %555 = sbr.rel (%p553) target = $region44
      $region43: #{tpu_custom_call.1} parent=5 // pred_region
        %s556 = ssub.s32 %s15, 2
        // Predicated region
        $region45: #{tpu_custom_call.1} parent=43 // pred_check
          %p557 = pneg %p112
        $region46: #{tpu_custom_call.1} parent=43 // pred_check_branch
          %559 = sbr.rel (%p557) target = $region48
        $region47: #{tpu_custom_call.1} parent=43 // pred_region
          %s560 = sand.u32 %s97, 1
          %s561 = scalar_lea.sflag [#allocation4], %s560
          %s562 = sand.u32 %s97, 1
          %s563 = smul.addr %s562, 128
          %s564 = scalar_lea.vmem [#allocation5], %s563
          %565 = dma.done %s561, 2048
        $region48: #{tpu_custom_call.1} parent=43 // pred_fallthru
          _
      $region44: #{tpu_custom_call.1} parent=5 // pred_fallthru
        _
    $region6: #{tpu_custom_call.1} parent=1 // loop_footer
      %s19 = sadd.s32 1, %s15
    $region7: #{tpu_custom_call.1} parent=1 // loop_footer_branch
      %14 = sbr.rel target = $region3
    $region8: #{tpu_custom_call.1} parent=1 // loop_exit
      _
    %566 = vsyncpa [#allocation3], 1
    %s567 = scalar_lea.sflag [#allocation3], 1
    %568 = vsyncpa %s567, 1
    %569 = vsyncpa [#allocation4], 1
    %s570 = scalar_lea.sflag [#allocation4], 1
    %571 = vsyncpa %s570, 1

</llo_original>
